<compile_context>
chip_gen: v6e
topology: v6e:2x2x1
jax: 0.10.0
libtpu: 0.0.40
codegen_flags: <defaults>
</compile_context>

<pallas_src>
import functools

import jax
import jax.numpy as jnp
from jax import lax
from jax.experimental import pallas as pl
from jax.experimental.pallas import tpu as pltpu


def _cdiv(a, b):
    return -(-a // b)


def _round_up(a, m):
    return _cdiv(a, m) * m


def _mlp_kernel(x_ref, w1_ref, w2_ref, w3_ref, b_ref, o_ref):
    """Fused MLP tile; batch on the LANE axis of all intermediates.

    x_ref : (Bt, D_in) f32   natural row-major layout straight from HBM
    w1_ref: (H1, D_in) bf16  resident
    w2_ref: (H2, H1)   bf16  resident
    w3_ref: (H2, 1)    f32   output layer as a column (VPU/XLU path)
    b_ref : (H, 3)     f32   packed biases: col0=b1, col1=b2, [0,2]=b3
    o_ref : (1, Bt)    f32   lane-dense output tile
    """
    b = b_ref[...]  # load packed biases once per tile

    # Layer 1: contract x's last (feature) dim so batch ends up on lanes.
    x = x_ref[...].astype(jnp.bfloat16)                       # VPU cast, in-kernel
    h = lax.dot_general(
        w1_ref[...], x,
        dimension_numbers=(((1,), (1,)), ((), ())),           # w1 @ x^T
        preferred_element_type=jnp.float32)                   # (H1, Bt) f32
    h = jnp.maximum(h + b[:, 0:1], 0.0)

    # Layer 2: standard MXU matmul, bf16 operands, f32 accumulate.
    h = jnp.dot(w2_ref[...], h.astype(jnp.bfloat16),
                preferred_element_type=jnp.float32)           # (H2, Bt) f32
    h = jnp.maximum(h + b[:, 1:2], 0.0)

    # Output layer (out_dim == 1): VPU multiply + sublane reduce (XLU), bias,
    # sigmoid (EUP).  Left off the MXU per review (kernel is DMA/overhead bound).
    logits = jnp.sum(h * w3_ref[...], axis=0, keepdims=True) + b[0:1, 2:3]
    o_ref[...] = jax.nn.sigmoid(logits).astype(o_ref.dtype)


@functools.partial(jax.jit, static_argnames=("block_b",))
def discriminator_forward(x, params, *, block_b=None):
    """x: (B, input_dim) float32. Returns (B, 1) float32 sigmoid probabilities."""
    B, d_in = x.shape
    w1, w2, w3 = params["w1"], params["w2"], params["w3"]  # PyTorch (out, in) layout
    b_all = params["b_all"]                                 # (H_max, 3) f32
    h1, h2 = w1.shape[0], w2.shape[0]

    # ---- batch-tile sizing (bytes-based, lane-dense) --------------------------
    # Per-grid-step overhead is ~0.35 us, so tiles are sized big: up to 16384 rows
    # (2 MiB of useful f32 x data per step; padded VMEM buffers + in-kernel
    # temporaries stay well under the 48 MiB limit below on v5e/v6e/v7x).
    # When more than one tile is needed, keep the grid length EVEN so v7x's two
    # TensorCores split the "parallel" axis evenly; for small/medium B a single
    # full-extent tile is best on single-TC chips (v5e/v6e).
    if block_b is None:
        cap = 16384
        if B > cap:
            n = _cdiv(B, cap)
            n += n % 2                                  # even grid for v7x megacore
            block_b = _round_up(_cdiv(B, n), 128)
        elif B >= 2048:
            block_b = _round_up(_cdiv(B, 2), 128)       # two >=1024-lane tiles
        else:
            block_b = B                                 # one full-extent tile
    if block_b >= B:
        block_b = B                                     # full-extent block is always legal
    else:
        block_b = max(128, (block_b // 128) * 128)      # keep tiles lane-dense
    grid = (_cdiv(B, block_b),)

    # Only the tiny resident weights get a dtype cast in the wrapper; the big x
    # stream is consumed directly (no separate f32->bf16/transpose pass over HBM).
    w1_b = w1.astype(jnp.bfloat16)                      # (H1, D_in)
    w2_b = w2.astype(jnp.bfloat16)                      # (H2, H1)
    w3_c = w3.reshape(h2, 1).astype(jnp.float32)        # (H2, 1)

    cost = pl.CostEstimate(
        flops=2 * B * (d_in * h1 + h1 * h2 + h2),
        transcendentals=B,
        bytes_accessed=B * (d_in * 4 + 4)
        + 2 * (w1.size + w2.size)
        + 4 * (w3.size + b_all.size),
    )

    out_t = pl.pallas_call(
        _mlp_kernel,
        out_shape=jax.ShapeDtypeStruct((1, B), jnp.float32),
        grid_spec=pltpu.PrefetchScalarGridSpec(
            num_scalar_prefetch=0,
            grid=grid,
            in_specs=[
                pl.BlockSpec((block_b, d_in), lambda i: (i, 0)),  # x tile, natural layout
                pl.BlockSpec(w1_b.shape, lambda i: (0, 0)),       # w1 (resident)
                pl.BlockSpec(w2_b.shape, lambda i: (0, 0)),       # w2 (resident)
                pl.BlockSpec(w3_c.shape, lambda i: (0, 0)),       # w3 column (resident)
                pl.BlockSpec(b_all.shape, lambda i: (0, 0)),      # packed biases
            ],
            out_specs=pl.BlockSpec((1, block_b), lambda i: (0, i)),
        ),
        compiler_params=pltpu.CompilerParams(
            dimension_semantics=("parallel",),
            vmem_limit_bytes=48 * 1024 * 1024,
        ),
        cost_estimate=cost,
    )(x, w1_b, w2_b, w3_c, b_all)

    # (1, B) -> (B, 1) is a flat-order no-op reshape (no transpose copy).
    return out_t.reshape(B, 1)


def init_params(key, input_dim, hidden_dims, output_dim):
    """Weights stored (out_dim, in_dim) (PyTorch Linear layout); biases packed + raw.

    NOTE: the packed-bias block (b_all) assumes hidden_dims[0] == hidden_dims[1],
    which holds for this Discriminator config ([64, 64]).
    """
    dims = [input_dim] + list(hidden_dims) + [output_dim]
    weights, biases = [], []
    keys = jax.random.split(key, len(dims) - 1)
    for i, (din, dout) in enumerate(zip(dims[:-1], dims[1:])):
        kw, kb = jax.random.split(keys[i])
        scale = 1.0 / jnp.sqrt(jnp.float32(din))        # mimics PyTorch Linear init range
        weights.append(jax.random.uniform(kw, (dout, din), jnp.float32, -scale, scale))
        biases.append(jax.random.uniform(kb, (dout,), jnp.float32, -scale, scale))

    h_max = max(dims[1:])
    b_all = jnp.zeros((h_max, len(biases)), jnp.float32)
    for j, b in enumerate(biases):
        b_all = b_all.at[: b.shape[0], j].set(b)

    params = {f"w{j + 1}": w for j, w in enumerate(weights)}
    params.update({f"b{j + 1}": b for j, b in enumerate(biases)})
    params["b_all"] = b_all
    return params


def reference_forward(x, params):
    h = jnp.maximum(x @ params["w1"].T + params["b1"], 0.0)
    h = jnp.maximum(h @ params["w2"].T + params["b2"], 0.0)
    h = h @ params["w3"].T + params["b3"]
    return jax.nn.sigmoid(h)


if __name__ == "__main__":
    input_dim = 32
    hidden_dims = [64, 64]
    output_dim = 1
    batch = 512

    key = jax.random.PRNGKey(0)
    kx, kp = jax.random.split(key)
    x = jax.random.normal(kx, (batch, input_dim), jnp.float32)
    params = init_params(kp, input_dim, hidden_dims, output_dim)

    out = discriminator_forward(x, params)
    out = jax.block_until_ready(out)

    ref = reference_forward(x, params)
    assert out.shape == (batch, output_dim), out.shape
    # bf16 MXU operands -> looser tolerance than a pure-f32 implementation
    max_err = float(jnp.max(jnp.abs(out - ref)))
    assert jnp.allclose(out, ref, atol=2e-2, rtol=2e-2), f"mismatch vs reference: {max_err}"

    print("KERNEL_OK")
</pallas_src>

<mosaic_0001>
module attributes {stable_mosaic.version = 11 : i64} {
  func.func @_mlp_kernel(%arg0: i32, %arg1: memref<512x32xf32, #tpu.memory_space<vmem>>, %arg2: memref<64x32xbf16, #tpu.memory_space<vmem>>, %arg3: memref<64x64xbf16, #tpu.memory_space<vmem>>, %arg4: memref<64x1xf32, #tpu.memory_space<vmem>>, %arg5: memref<64x3xf32, #tpu.memory_space<vmem>>, %arg6: memref<1x512xf32, #tpu.memory_space<vmem>>) attributes {dimension_semantics = [#tpu.dimension_semantics<parallel>], iteration_bounds = array<i64: 1>, scalar_prefetch = 0 : i64, scratch_operands = 0 : i64, tpu.core_type = #tpu.core_type<tc>, window_params = [{transform_indices = @transform_0, window_bounds = array<i64: 512, 32>}, {pipeline_mode = #tpu.pipeline_mode<synchronous>, transform_indices = @transform_1, window_bounds = array<i64: 64, 32>}, {pipeline_mode = #tpu.pipeline_mode<synchronous>, transform_indices = @transform_2, window_bounds = array<i64: 64, 64>}, {pipeline_mode = #tpu.pipeline_mode<synchronous>, transform_indices = @transform_3, window_bounds = array<i64: 64, 1>}, {pipeline_mode = #tpu.pipeline_mode<synchronous>, transform_indices = @transform_4, window_bounds = array<i64: 64, 3>}, {transform_indices = @transform_5, window_bounds = array<i64: 1, 512>}]} {
    %c0 = arith.constant 0 : index
    %c0_0 = arith.constant 0 : index
    %0 = vector.load %arg5[%c0, %c0_0] : memref<64x3xf32, #tpu.memory_space<vmem>>, vector<64x3xf32>
    %c0_1 = arith.constant 0 : index
    %c0_2 = arith.constant 0 : index
    %1 = vector.load %arg1[%c0_1, %c0_2] : memref<512x32xf32, #tpu.memory_space<vmem>>, vector<512x32xf32>
    %2 = arith.truncf %1 : vector<512x32xf32> to vector<512x32xbf16>
    %c0_3 = arith.constant 0 : index
    %c0_4 = arith.constant 0 : index
    %3 = vector.load %arg2[%c0_3, %c0_4] : memref<64x32xbf16, #tpu.memory_space<vmem>>, vector<64x32xbf16>
    %cst = arith.constant dense<0.000000e+00> : vector<64x512xf32>
    %4 = tpu.matmul %3, %2, %cst {dimension_numbers = #tpu.dot_dimension_numbers<[1], [1], [0], [0], [0, 0, 1, 0], [], []>} : vector<64x32xbf16>, vector<512x32xbf16>, vector<64x512xf32> -> vector<64x512xf32>
    %5 = vector.extract_strided_slice %0 {offsets = [0, 0], sizes = [64, 1], strides = [1, 1]} : vector<64x3xf32> to vector<64x1xf32>
    %6 = vector.broadcast %5 : vector<64x1xf32> to vector<64x512xf32>
    %7 = arith.addf %4, %6 : vector<64x512xf32>
    %cst_5 = arith.constant 0.000000e+00 : f32
    %8 = vector.broadcast %cst_5 : f32 to vector<64x512xf32>
    %9 = arith.maximumf %7, %8 : vector<64x512xf32>
    %c0_6 = arith.constant 0 : index
    %c0_7 = arith.constant 0 : index
    %10 = vector.load %arg3[%c0_6, %c0_7] : memref<64x64xbf16, #tpu.memory_space<vmem>>, vector<64x64xbf16>
    %11 = arith.truncf %9 : vector<64x512xf32> to vector<64x512xbf16>
    %cst_8 = arith.constant dense<0.000000e+00> : vector<64x512xf32>
    %12 = tpu.matmul %10, %11, %cst_8 {dimension_numbers = #tpu.dot_dimension_numbers<[1], [0], [0], [1], [0, 0, 1, 1], [], []>} : vector<64x64xbf16>, vector<64x512xbf16>, vector<64x512xf32> -> vector<64x512xf32>
    %13 = vector.extract_strided_slice %0 {offsets = [0, 1], sizes = [64, 1], strides = [1, 1]} : vector<64x3xf32> to vector<64x1xf32>
    %14 = vector.broadcast %13 : vector<64x1xf32> to vector<64x512xf32>
    %15 = arith.addf %12, %14 : vector<64x512xf32>
    %cst_9 = arith.constant 0.000000e+00 : f32
    %16 = vector.broadcast %cst_9 : f32 to vector<64x512xf32>
    %17 = arith.maximumf %15, %16 : vector<64x512xf32>
    %c0_10 = arith.constant 0 : index
    %c0_11 = arith.constant 0 : index
    %18 = vector.load %arg4[%c0_10, %c0_11] : memref<64x1xf32, #tpu.memory_space<vmem>>, vector<64x1xf32>
    %19 = vector.broadcast %18 : vector<64x1xf32> to vector<64x512xf32>
    %20 = arith.mulf %17, %19 : vector<64x512xf32>
    %cst_12 = arith.constant dense<0.000000e+00> : vector<512xf32>
    %21 = vector.multi_reduction <add>, %20, %cst_12 [0] : vector<64x512xf32> to vector<512xf32>
    %22 = vector.shape_cast %21 : vector<512xf32> to vector<1x512xf32>
    %23 = vector.extract_strided_slice %0 {offsets = [0, 2], sizes = [1, 1], strides = [1, 1]} : vector<64x3xf32> to vector<1x1xf32>
    %24 = vector.broadcast %23 : vector<1x1xf32> to vector<1x512xf32>
    %25 = arith.addf %22, %24 : vector<1x512xf32>
    %26 = arith.negf %25 : vector<1x512xf32>
    %27 = math.exp %26 : vector<1x512xf32>
    %cst_13 = arith.constant 1.000000e+00 : f32
    %28 = vector.broadcast %cst_13 : f32 to vector<1x512xf32>
    %29 = arith.addf %28, %27 : vector<1x512xf32>
    %30 = arith.divf %28, %29 : vector<1x512xf32>
    %c0_14 = arith.constant 0 : index
    %c0_15 = arith.constant 0 : index
    %31 = vector.load %arg6[%c0_14, %c0_15] : memref<1x512xf32, #tpu.memory_space<vmem>>, vector<1x512xf32>
    tpu.vector_store %arg6[%c0_14, %c0_15], %30 {strides = array<i32>} : memref<1x512xf32, #tpu.memory_space<vmem>>, vector<1x512xf32>,
    return
  }
  func.func @transform_0(%arg0: i32) -> (i32, i32) {
    %c0_i32 = arith.constant 0 : i32
    %c0_i32_0 = arith.constant 0 : i32
    return %arg0, %c0_i32 : i32, i32
  }
  func.func @transform_1(%arg0: i32) -> (i32, i32) {
    %c0_i32 = arith.constant 0 : i32
    %c0_i32_0 = arith.constant 0 : i32
    %c0_i32_1 = arith.constant 0 : i32
    return %c0_i32, %c0_i32_0 : i32, i32
  }
  func.func @transform_2(%arg0: i32) -> (i32, i32) {
    %c0_i32 = arith.constant 0 : i32
    %c0_i32_0 = arith.constant 0 : i32
    %c0_i32_1 = arith.constant 0 : i32
    return %c0_i32, %c0_i32_0 : i32, i32
  }
  func.func @transform_3(%arg0: i32) -> (i32, i32) {
    %c0_i32 = arith.constant 0 : i32
    %c0_i32_0 = arith.constant 0 : i32
    %c0_i32_1 = arith.constant 0 : i32
    return %c0_i32, %c0_i32_0 : i32, i32
  }
  func.func @transform_4(%arg0: i32) -> (i32, i32) {
    %c0_i32 = arith.constant 0 : i32
    %c0_i32_0 = arith.constant 0 : i32
    %c0_i32_1 = arith.constant 0 : i32
    return %c0_i32, %c0_i32_0 : i32, i32
  }
  func.func @transform_5(%arg0: i32) -> (i32, i32) {
    %c0_i32 = arith.constant 0 : i32
    %c0_i32_0 = arith.constant 0 : i32
    return %c0_i32, %arg0 : i32, i32
  }
}

</mosaic_0001>

<llo_original>
// kernel: discriminator_forward.1
$region0: #{discriminator_forward.1}
  #allocation0 [shape = 'u32[]', space=smem, size = 0x4, offset = 0x4, fixed_abs, tag = 'smem constant byte address 0x4 - core index']
  #allocation1 [shape = 'u32[144,128]{1,0:T(1,128)}', space=vmem, size = 0x12000, scoped, tag = 'internal scratch']
  %s0 = inlined_call_operand.vmem [shape: f32[512,32], index: 0, kind: input, shape index: {}]
  %s1 = inlined_call_operand.vmem [shape: bf16[64,32], index: 1, kind: input, shape index: {}]
  %s2 = inlined_call_operand.vmem [shape: bf16[64,64], index: 2, kind: input, shape index: {}]
  %s3 = inlined_call_operand.vmem [shape: f32[64,1], index: 3, kind: input, shape index: {}]
  %s4 = inlined_call_operand.vmem [shape: f32[64,3], index: 4, kind: input, shape index: {}]
  %s5 = inlined_call_operand.hbm [shape: f32[1,512], index: 5, kind: output, shape index: {}]
  %s6 = sld [smem:[#allocation0]]
  $region30: #{discriminator_forward.1} parent=0
    _
  %s8 = ssub.s32 1, %s6
  %s9 = scalar_select 0, %s8, %s6
  $region1: #{discriminator_forward.1} parent=0
    #allocation2 [shape = 'u8[2048]{0}', space=vmem, size = 0x800, scoped, tag = 'output window, operand 0, single buffered']
    #allocation3 [shape = 's32[1]{0}', space=sflag, size = 0x4, scoped, tag = 'scoped memory for discriminator_forward.1']
    %10 = vsyncpa [#allocation3], 0
    // Predicated region
    $region2: #{discriminator_forward.1} parent=1 // pred_check
      _
    $region3: #{discriminator_forward.1} parent=1 // pred_check_branch
      %12 = sbr.rel (0) target = $region5
    $region4: #{discriminator_forward.1} parent=1 // pred_region
      _
    $region5: #{discriminator_forward.1} parent=1 // pred_fallthru
      _
    // Predicated region
    $region6: #{discriminator_forward.1} parent=1 // pred_check
      _
    $region7: #{discriminator_forward.1} parent=1 // pred_check_branch
      %14 = sbr.rel (0) target = $region9
    $region8: #{discriminator_forward.1} parent=1 // pred_region
      _
    $region9: #{discriminator_forward.1} parent=1 // pred_fallthru
      _
    // Predicated region
    $region10: #{discriminator_forward.1} parent=1 // pred_check
      _
    $region11: #{discriminator_forward.1} parent=1 // pred_check_branch
      %16 = sbr.rel (0) target = $region13
    $region12: #{discriminator_forward.1} parent=1 // pred_region
      _
    $region13: #{discriminator_forward.1} parent=1 // pred_fallthru
      _
    // Predicated region
    $region14: #{discriminator_forward.1} parent=1 // pred_check
      _
    $region15: #{discriminator_forward.1} parent=1 // pred_check_branch
      %18 = sbr.rel (0) target = $region17
    $region16: #{discriminator_forward.1} parent=1 // pred_region
      _
    $region17: #{discriminator_forward.1} parent=1 // pred_fallthru
      _
    // Predicated region
    $region18: #{discriminator_forward.1} parent=1 // pred_check
      _
    $region19: #{discriminator_forward.1} parent=1 // pred_check_branch
      %20 = sbr.rel (0) target = $region21
    $region20: #{discriminator_forward.1} parent=1 // pred_region
      _
    $region21: #{discriminator_forward.1} parent=1 // pred_fallthru
      _
    %v22 = vld [vmem:[%s4] sm:$0xff]
    %v23 = vld [vmem:[%s4 + $0x8] sm:$0xff]
    %v24 = vld [vmem:[%s4 + $0x10] sm:$0xff]
    %v25 = vld [vmem:[%s4 + $0x18] sm:$0xff]
    %v26 = vld [vmem:[%s4 + $0x20] sm:$0xff]
    %v27 = vld [vmem:[%s4 + $0x28] sm:$0xff]
    %v28 = vld [vmem:[%s4 + $0x30] sm:$0xff]
    %v29 = vld [vmem:[%s4 + $0x38] sm:$0xff]
    %v30 = vld [vmem:[%s0] sm:$0xff]
    %v31 = vld [vmem:[%s0 + $0x8] sm:$0xff]
    %v32 = vld [vmem:[%s0 + $0x10] sm:$0xff]
    %v33 = vld [vmem:[%s0 + $0x18] sm:$0xff]
    %v34 = vld [vmem:[%s0 + $0x20] sm:$0xff]
    %v35 = vld [vmem:[%s0 + $0x28] sm:$0xff]
    %v36 = vld [vmem:[%s0 + $0x30] sm:$0xff]
    %v37 = vld [vmem:[%s0 + $0x38] sm:$0xff]
    %v38 = vld [vmem:[%s0 + $0x40] sm:$0xff]
    %v39 = vld [vmem:[%s0 + $0x48] sm:$0xff]
    %v40 = vld [vmem:[%s0 + $0x50] sm:$0xff]
    %v41 = vld [vmem:[%s0 + $0x58] sm:$0xff]
    %v42 = vld [vmem:[%s0 + $0x60] sm:$0xff]
    %v43 = vld [vmem:[%s0 + $0x68] sm:$0xff]
    %v44 = vld [vmem:[%s0 + $0x70] sm:$0xff]
    %v45 = vld [vmem:[%s0 + $0x78] sm:$0xff]
    %v46 = vld [vmem:[%s0 + $0x80] sm:$0xff]
    %v47 = vld [vmem:[%s0 + $0x88] sm:$0xff]
    %v48 = vld [vmem:[%s0 + $0x90] sm:$0xff]
    %v49 = vld [vmem:[%s0 + $0x98] sm:$0xff]
    %v50 = vld [vmem:[%s0 + $0xa0] sm:$0xff]
    %v51 = vld [vmem:[%s0 + $0xa8] sm:$0xff]
    %v52 = vld [vmem:[%s0 + $0xb0] sm:$0xff]
    %v53 = vld [vmem:[%s0 + $0xb8] sm:$0xff]
    %v54 = vld [vmem:[%s0 + $0xc0] sm:$0xff]
    %v55 = vld [vmem:[%s0 + $0xc8] sm:$0xff]
    %v56 = vld [vmem:[%s0 + $0xd0] sm:$0xff]
    %v57 = vld [vmem:[%s0 + $0xd8] sm:$0xff]
    %v58 = vld [vmem:[%s0 + $0xe0] sm:$0xff]
    %v59 = vld [vmem:[%s0 + $0xe8] sm:$0xff]
    %v60 = vld [vmem:[%s0 + $0xf0] sm:$0xff]
    %v61 = vld [vmem:[%s0 + $0xf8] sm:$0xff]
    %v62 = vld [vmem:[%s0 + $0x100] sm:$0xff]
    %v63 = vld [vmem:[%s0 + $0x108] sm:$0xff]
    %v64 = vld [vmem:[%s0 + $0x110] sm:$0xff]
    %v65 = vld [vmem:[%s0 + $0x118] sm:$0xff]
    %v66 = vld [vmem:[%s0 + $0x120] sm:$0xff]
    %v67 = vld [vmem:[%s0 + $0x128] sm:$0xff]
    %v68 = vld [vmem:[%s0 + $0x130] sm:$0xff]
    %v69 = vld [vmem:[%s0 + $0x138] sm:$0xff]
    %v70 = vld [vmem:[%s0 + $0x140] sm:$0xff]
    %v71 = vld [vmem:[%s0 + $0x148] sm:$0xff]
    %v72 = vld [vmem:[%s0 + $0x150] sm:$0xff]
    %v73 = vld [vmem:[%s0 + $0x158] sm:$0xff]
    %v74 = vld [vmem:[%s0 + $0x160] sm:$0xff]
    %v75 = vld [vmem:[%s0 + $0x168] sm:$0xff]
    %v76 = vld [vmem:[%s0 + $0x170] sm:$0xff]
    %v77 = vld [vmem:[%s0 + $0x178] sm:$0xff]
    %v78 = vld [vmem:[%s0 + $0x180] sm:$0xff]
    %v79 = vld [vmem:[%s0 + $0x188] sm:$0xff]
    %v80 = vld [vmem:[%s0 + $0x190] sm:$0xff]
    %v81 = vld [vmem:[%s0 + $0x198] sm:$0xff]
    %v82 = vld [vmem:[%s0 + $0x1a0] sm:$0xff]
    %v83 = vld [vmem:[%s0 + $0x1a8] sm:$0xff]
    %v84 = vld [vmem:[%s0 + $0x1b0] sm:$0xff]
    %v85 = vld [vmem:[%s0 + $0x1b8] sm:$0xff]
    %v86 = vld [vmem:[%s0 + $0x1c0] sm:$0xff]
    %v87 = vld [vmem:[%s0 + $0x1c8] sm:$0xff]
    %v88 = vld [vmem:[%s0 + $0x1d0] sm:$0xff]
    %v89 = vld [vmem:[%s0 + $0x1d8] sm:$0xff]
    %v90 = vld [vmem:[%s0 + $0x1e0] sm:$0xff]
    %v91 = vld [vmem:[%s0 + $0x1e8] sm:$0xff]
    %v92 = vld [vmem:[%s0 + $0x1f0] sm:$0xff]
    %v93 = vld [vmem:[%s0 + $0x1f8] sm:$0xff]
    %v94 = vpack.c.bf16 %v31, %v30
    %v95 = vpack.c.bf16 %v33, %v32
    %v96 = vpack.c.bf16 %v35, %v34
    %v97 = vpack.c.bf16 %v37, %v36
    %v98 = vpack.c.bf16 %v39, %v38
    %v99 = vpack.c.bf16 %v41, %v40
    %v100 = vpack.c.bf16 %v43, %v42
    %v101 = vpack.c.bf16 %v45, %v44
    %v102 = vpack.c.bf16 %v47, %v46
    %v103 = vpack.c.bf16 %v49, %v48
    %v104 = vpack.c.bf16 %v51, %v50
    %v105 = vpack.c.bf16 %v53, %v52
    %v106 = vpack.c.bf16 %v55, %v54
    %v107 = vpack.c.bf16 %v57, %v56
    %v108 = vpack.c.bf16 %v59, %v58
    %v109 = vpack.c.bf16 %v61, %v60
    %v110 = vpack.c.bf16 %v63, %v62
    %v111 = vpack.c.bf16 %v65, %v64
    %v112 = vpack.c.bf16 %v67, %v66
    %v113 = vpack.c.bf16 %v69, %v68
    %v114 = vpack.c.bf16 %v71, %v70
    %v115 = vpack.c.bf16 %v73, %v72
    %v116 = vpack.c.bf16 %v75, %v74
    %v117 = vpack.c.bf16 %v77, %v76
    %v118 = vpack.c.bf16 %v79, %v78
    %v119 = vpack.c.bf16 %v81, %v80
    %v120 = vpack.c.bf16 %v83, %v82
    %v121 = vpack.c.bf16 %v85, %v84
    %v122 = vpack.c.bf16 %v87, %v86
    %v123 = vpack.c.bf16 %v89, %v88
    %v124 = vpack.c.bf16 %v91, %v90
    %v125 = vpack.c.bf16 %v93, %v92
    %v126 = vld [vmem:[%s1] sm:$0xf]
    %v127 = vld [vmem:[%s1 + $0x4] sm:$0xf]
    %v128 = vld [vmem:[%s1 + $0x8] sm:$0xf]
    %v129 = vld [vmem:[%s1 + $0xc] sm:$0xf]
    %v130 = vld [vmem:[%s1 + $0x10] sm:$0xf]
    %v131 = vld [vmem:[%s1 + $0x14] sm:$0xf]
    %v132 = vld [vmem:[%s1 + $0x18] sm:$0xf]
    %v133 = vld [vmem:[%s1 + $0x1c] sm:$0xf]
    %135 = vset.pattern.permute.xlu0 0
    %136 = vperm.xlu0 %135, %v22
    %v137 = vpop.permute.xlu0 %136
    %140 = vset.pattern.permute.xlu0 0
    %141 = vperm.xlu0 %140, %v23
    %v142 = vpop.permute.xlu0 %141
    %145 = vset.pattern.permute.xlu0 0
    %146 = vperm.xlu0 %145, %v24
    %v147 = vpop.permute.xlu0 %146
    %150 = vset.pattern.permute.xlu0 0
    %151 = vperm.xlu0 %150, %v25
    %v152 = vpop.permute.xlu0 %151
    %155 = vset.pattern.permute.xlu0 0
    %156 = vperm.xlu0 %155, %v26
    %v157 = vpop.permute.xlu0 %156
    %160 = vset.pattern.permute.xlu0 0
    %161 = vperm.xlu0 %160, %v27
    %v162 = vpop.permute.xlu0 %161
    %165 = vset.pattern.permute.xlu0 0
    %166 = vperm.xlu0 %165, %v28
    %v167 = vpop.permute.xlu0 %166
    %170 = vset.pattern.permute.xlu0 0
    %171 = vperm.xlu0 %170, %v29
    %v172 = vpop.permute.xlu0 %171
    %v182 = vunpack.c.l.b16 %v126
    %v183 = vunpack.c.l.b16 %v127
    %v184 = vunpack.c.l.b16 %v128
    %v185 = vunpack.c.l.b16 %v129
    %v186 = vunpack.c.l.b16 %v130
    %v187 = vunpack.c.l.b16 %v131
    %v188 = vunpack.c.l.b16 %v132
    %v189 = vunpack.c.l.b16 %v133
    %v190 = vpack.c.b16 %v183, %v182
    %v191 = vpack.c.b16 %v185, %v184
    %v192 = vpack.c.b16 %v187, %v186
    %v193 = vpack.c.b16 %v189, %v188
    %vm194 = vcmask 261120
    %v196 = vsel %vm194, %v190, 0
    %v199 = vsel %vm194, %v191, 0
    %v202 = vsel %vm194, %v192, 0
    %v205 = vsel %vm194, %v193, 0
    %v208 = vsel %vm194, %v94, 0
    %v211 = vsel %vm194, %v95, 0
    %v214 = vsel %vm194, %v96, 0
    %v217 = vsel %vm194, %v97, 0
    %v220 = vsel %vm194, %v98, 0
    %v223 = vsel %vm194, %v99, 0
    %v226 = vsel %vm194, %v100, 0
    %v229 = vsel %vm194, %v101, 0
    %v232 = vsel %vm194, %v102, 0
    %v235 = vsel %vm194, %v103, 0
    %v238 = vsel %vm194, %v104, 0
    %v241 = vsel %vm194, %v105, 0
    %v244 = vsel %vm194, %v106, 0
    %v247 = vsel %vm194, %v107, 0
    %v250 = vsel %vm194, %v108, 0
    %v253 = vsel %vm194, %v109, 0
    %v256 = vsel %vm194, %v110, 0
    %v259 = vsel %vm194, %v111, 0
    %v262 = vsel %vm194, %v112, 0
    %v265 = vsel %vm194, %v113, 0
    %v268 = vsel %vm194, %v114, 0
    %v271 = vsel %vm194, %v115, 0
    %v274 = vsel %vm194, %v116, 0
    %v277 = vsel %vm194, %v117, 0
    %v280 = vsel %vm194, %v118, 0
    %v283 = vsel %vm194, %v119, 0
    %v286 = vsel %vm194, %v120, 0
    %v289 = vsel %vm194, %v121, 0
    %v292 = vsel %vm194, %v122, 0
    %v295 = vsel %vm194, %v123, 0
    %v298 = vsel %vm194, %v124, 0
    %v301 = vsel %vm194, %v125, 0
    %303 = vmatprep.subr.bf16.mxu0 0
    %304 = vmatpush1.bf16.xpose.msra.mxu0 %v229
    %305 = vmatprep.subr.bf16.mxu0 0
    %306 = vmatpush1.bf16.xpose.msra.mxu0 %v226
    %307 = vmatprep.subr.bf16.mxu0 0
    %308 = vmatpush1.bf16.xpose.msra.mxu0 %v223
    %309 = vmatprep.subr.bf16.mxu0 0
    %310 = vmatpush1.bf16.xpose.msra.mxu0 %v220
    %311 = vmatprep.subr.bf16.mxu0 0
    %312 = vmatpush1.bf16.xpose.msra.mxu0 %v217
    %313 = vmatprep.subr.bf16.mxu0 0
    %314 = vmatpush1.bf16.xpose.msra.mxu0 %v214
    %315 = vmatprep.subr.bf16.mxu0 0
    %316 = vmatpush1.bf16.xpose.msra.mxu0 %v211
    %317 = vmatprep.subr.bf16.mxu0 0
    %318 = vmatpush1.bf16.xpose.msra.mxu0 %v208
    %319 = vmatprep.subr.bf16.mxu0 0
    %320 = vmatpush2.bf16.xpose.msra.mxu0 %v253
    %321 = vmatprep.subr.bf16.mxu0 0
    %322 = vmatpush2.bf16.xpose.msra.mxu0 %v250
    %323 = vmatprep.subr.bf16.mxu0 0
    %324 = vmatpush2.bf16.xpose.msra.mxu0 %v247
    %325 = vmatprep.subr.bf16.mxu0 0
    %326 = vmatpush2.bf16.xpose.msra.mxu0 %v244
    %327 = vmatprep.subr.bf16.mxu0 0
    %328 = vmatpush2.bf16.xpose.msra.mxu0 %v241
    %329 = vmatprep.subr.bf16.mxu0 0
    %330 = vmatpush2.bf16.xpose.msra.mxu0 %v238
    %331 = vmatprep.subr.bf16.mxu0 0
    %332 = vmatpush2.bf16.xpose.msra.mxu0 %v235
    %333 = vmatprep.subr.bf16.mxu0 0
    %334 = vmatpush2.bf16.xpose.msra.mxu0 %v232
    %335 = vmatprep.mubr.bf16.mxu0 0
    %336 = vmatmul.mubr.bf16.gmra.mxu0 %v196
    %v337 = vpop.f32.mrf.mxu0
    %v338 = vadd.f32 %v137, %v337
    %v339 = vpop.f32.mrf.mxu0
    %v340 = vadd.f32 %v137, %v339
    %v341 = vpop.f32.mrf.mxu0
    %v342 = vadd.f32 %v142, %v341
    %v343 = vpop.f32.mrf.mxu0
    %v344 = vadd.f32 %v142, %v343
    %345 = vmatprep.mubr.bf16.mxu0 0
    %346 = vmatmul.mubr.bf16.gmra.mxu0 %v199
    %v347 = vpop.f32.mrf.mxu0
    %v348 = vadd.f32 %v147, %v347
    %v349 = vpop.f32.mrf.mxu0
    %v350 = vadd.f32 %v147, %v349
    %v351 = vpop.f32.mrf.mxu0
    %v352 = vadd.f32 %v152, %v351
    %v353 = vpop.f32.mrf.mxu0
    %v354 = vadd.f32 %v152, %v353
    %355 = vmatprep.mubr.bf16.mxu0 0
    %356 = vmatmul.mubr.bf16.gmra.mxu0 %v202
    %v357 = vpop.f32.mrf.mxu0
    %v358 = vadd.f32 %v157, %v357
    %v359 = vpop.f32.mrf.mxu0
    %v360 = vadd.f32 %v157, %v359
    %v361 = vpop.f32.mrf.mxu0
    %v362 = vadd.f32 %v162, %v361
    %v363 = vpop.f32.mrf.mxu0
    %v364 = vadd.f32 %v162, %v363
    %365 = vmatprep.mubr.bf16.mxu0 0
    %366 = vmatmul.mubr.bf16.gmra.mxu0 %v205
    %v367 = vpop.f32.mrf.mxu0
    %v368 = vadd.f32 %v167, %v367
    %v369 = vpop.f32.mrf.mxu0
    %v370 = vadd.f32 %v167, %v369
    %v371 = vpop.f32.mrf.mxu0
    %v372 = vadd.f32 %v172, %v371
    %v373 = vpop.f32.mrf.mxu0
    %v374 = vadd.f32 %v172, %v373
    %375 = vdwg.mxu0
    %376 = vmatprep.subr.bf16.mxu0 0
    %377 = vmatpush1.bf16.xpose.msra.mxu0 %v277
    %378 = vmatprep.subr.bf16.mxu0 0
    %379 = vmatpush1.bf16.xpose.msra.mxu0 %v274
    %380 = vmatprep.subr.bf16.mxu0 0
    %381 = vmatpush1.bf16.xpose.msra.mxu0 %v271
    %382 = vmatprep.subr.bf16.mxu0 0
    %383 = vmatpush1.bf16.xpose.msra.mxu0 %v268
    %384 = vmatprep.subr.bf16.mxu0 0
    %385 = vmatpush1.bf16.xpose.msra.mxu0 %v265
    %386 = vmatprep.subr.bf16.mxu0 0
    %387 = vmatpush1.bf16.xpose.msra.mxu0 %v262
    %388 = vmatprep.subr.bf16.mxu0 0
    %389 = vmatpush1.bf16.xpose.msra.mxu0 %v259
    %390 = vmatprep.subr.bf16.mxu0 0
    %391 = vmatpush1.bf16.xpose.msra.mxu0 %v256
    %392 = vmatprep.subr.bf16.mxu0 0
    %393 = vmatpush2.bf16.xpose.msra.mxu0 %v301
    %394 = vmatprep.subr.bf16.mxu0 0
    %395 = vmatpush2.bf16.xpose.msra.mxu0 %v298
    %396 = vmatprep.subr.bf16.mxu0 0
    %397 = vmatpush2.bf16.xpose.msra.mxu0 %v295
    %398 = vmatprep.subr.bf16.mxu0 0
    %399 = vmatpush2.bf16.xpose.msra.mxu0 %v292
    %400 = vmatprep.subr.bf16.mxu0 0
    %401 = vmatpush2.bf16.xpose.msra.mxu0 %v289
    %402 = vmatprep.subr.bf16.mxu0 0
    %403 = vmatpush2.bf16.xpose.msra.mxu0 %v286
    %404 = vmatprep.subr.bf16.mxu0 0
    %405 = vmatpush2.bf16.xpose.msra.mxu0 %v283
    %406 = vmatprep.subr.bf16.mxu0 0
    %407 = vmatpush2.bf16.xpose.msra.mxu0 %v280
    %408 = vmatprep.mubr.bf16.mxu0 0
    %409 = vmatmul.mubr.bf16.gmra.mxu0 %v196
    %v410 = vpop.f32.mrf.mxu0
    %v411 = vadd.f32 %v137, %v410
    %v412 = vpop.f32.mrf.mxu0
    %v413 = vadd.f32 %v137, %v412
    %v414 = vpop.f32.mrf.mxu0
    %v415 = vadd.f32 %v142, %v414
    %v416 = vpop.f32.mrf.mxu0
    %v417 = vadd.f32 %v142, %v416
    %418 = vmatprep.mubr.bf16.mxu0 0
    %419 = vmatmul.mubr.bf16.gmra.mxu0 %v199
    %v420 = vpop.f32.mrf.mxu0
    %v421 = vadd.f32 %v147, %v420
    %v422 = vpop.f32.mrf.mxu0
    %v423 = vadd.f32 %v147, %v422
    %v424 = vpop.f32.mrf.mxu0
    %v425 = vadd.f32 %v152, %v424
    %v426 = vpop.f32.mrf.mxu0
    %v427 = vadd.f32 %v152, %v426
    %428 = vmatprep.mubr.bf16.mxu0 0
    %429 = vmatmul.mubr.bf16.gmra.mxu0 %v202
    %v430 = vpop.f32.mrf.mxu0
    %v431 = vadd.f32 %v157, %v430
    %v432 = vpop.f32.mrf.mxu0
    %v433 = vadd.f32 %v157, %v432
    %v434 = vpop.f32.mrf.mxu0
    %v435 = vadd.f32 %v162, %v434
    %v436 = vpop.f32.mrf.mxu0
    %v437 = vadd.f32 %v162, %v436
    %438 = vmatprep.mubr.bf16.mxu0 0
    %439 = vmatmul.mubr.bf16.gmra.mxu0 %v205
    %v440 = vpop.f32.mrf.mxu0
    %v441 = vadd.f32 %v167, %v440
    %v442 = vpop.f32.mrf.mxu0
    %v443 = vadd.f32 %v167, %v442
    %v444 = vpop.f32.mrf.mxu0
    %v445 = vadd.f32 %v172, %v444
    %v446 = vpop.f32.mrf.mxu0
    %v447 = vadd.f32 %v172, %v446
    %448 = vdwg.mxu0
    %v449 = vmax.f32 %v338, 0.0
    %v450 = vmax.f32 %v340, 0.0
    %v451 = vmax.f32 %v411, 0.0
    %v452 = vmax.f32 %v413, 0.0
    %v453 = vmax.f32 %v342, 0.0
    %v454 = vmax.f32 %v344, 0.0
    %v455 = vmax.f32 %v415, 0.0
    %v456 = vmax.f32 %v417, 0.0
    %v457 = vmax.f32 %v348, 0.0
    %v458 = vmax.f32 %v350, 0.0
    %v459 = vmax.f32 %v421, 0.0
    %v460 = vmax.f32 %v423, 0.0
    %v461 = vmax.f32 %v352, 0.0
    %v462 = vmax.f32 %v354, 0.0
    %v463 = vmax.f32 %v425, 0.0
    %v464 = vmax.f32 %v427, 0.0
    %v465 = vmax.f32 %v358, 0.0
    %v466 = vmax.f32 %v360, 0.0
    %v467 = vmax.f32 %v431, 0.0
    %v468 = vmax.f32 %v433, 0.0
    %v469 = vmax.f32 %v362, 0.0
    %v470 = vmax.f32 %v364, 0.0
    %v471 = vmax.f32 %v435, 0.0
    %v472 = vmax.f32 %v437, 0.0
    %v473 = vmax.f32 %v368, 0.0
    %v474 = vmax.f32 %v370, 0.0
    %v475 = vmax.f32 %v441, 0.0
    %v476 = vmax.f32 %v443, 0.0
    %v477 = vmax.f32 %v372, 0.0
    %v478 = vmax.f32 %v374, 0.0
    %v479 = vmax.f32 %v445, 0.0
    %v480 = vmax.f32 %v447, 0.0
    %v481 = vld [vmem:[%s2] sm:$0xf]
    %v482 = vld [vmem:[%s2 + $0x4] sm:$0xf]
    %v483 = vld [vmem:[%s2 + $0x8] sm:$0xf]
    %v484 = vld [vmem:[%s2 + $0xc] sm:$0xf]
    %v485 = vld [vmem:[%s2 + $0x10] sm:$0xf]
    %v486 = vld [vmem:[%s2 + $0x14] sm:$0xf]
    %v487 = vld [vmem:[%s2 + $0x18] sm:$0xf]
    %v488 = vld [vmem:[%s2 + $0x1c] sm:$0xf]
    %v489 = vpack.c.bf16 %v453, %v449
    %v490 = vpack.c.bf16 %v454, %v450
    %v491 = vpack.c.bf16 %v455, %v451
    %v492 = vpack.c.bf16 %v456, %v452
    %v493 = vpack.c.bf16 %v461, %v457
    %v494 = vpack.c.bf16 %v462, %v458
    %v495 = vpack.c.bf16 %v463, %v459
    %v496 = vpack.c.bf16 %v464, %v460
    %v497 = vpack.c.bf16 %v469, %v465
    %v498 = vpack.c.bf16 %v470, %v466
    %v499 = vpack.c.bf16 %v471, %v467
    %v500 = vpack.c.bf16 %v472, %v468
    %v501 = vpack.c.bf16 %v477, %v473
    %v502 = vpack.c.bf16 %v478, %v474
    %v503 = vpack.c.bf16 %v479, %v475
    %v504 = vpack.c.bf16 %v480, %v476
    %505 = vset.pattern.permute.xlu0 1
    %506 = vperm.xlu0 %505, %v22
    %v507 = vpop.permute.xlu0 %506
    %509 = vset.pattern.permute.xlu0 1
    %510 = vperm.xlu0 %509, %v23
    %v511 = vpop.permute.xlu0 %510
    %513 = vset.pattern.permute.xlu0 1
    %514 = vperm.xlu0 %513, %v24
    %v515 = vpop.permute.xlu0 %514
    %517 = vset.pattern.permute.xlu0 1
    %518 = vperm.xlu0 %517, %v25
    %v519 = vpop.permute.xlu0 %518
    %521 = vset.pattern.permute.xlu0 1
    %522 = vperm.xlu0 %521, %v26
    %v523 = vpop.permute.xlu0 %522
    %525 = vset.pattern.permute.xlu0 1
    %526 = vperm.xlu0 %525, %v27
    %v527 = vpop.permute.xlu0 %526
    %529 = vset.pattern.permute.xlu0 1
    %530 = vperm.xlu0 %529, %v28
    %v531 = vpop.permute.xlu0 %530
    %533 = vset.pattern.permute.xlu0 1
    %534 = vperm.xlu0 %533, %v29
    %v535 = vpop.permute.xlu0 %534
    %v545 = vunpack.c.l.b16 %v481
    %v546 = vunpack.c.l.b16 %v482
    %v547 = vunpack.c.l.b16 %v483
    %v548 = vunpack.c.l.b16 %v484
    %v549 = vunpack.c.l.b16 %v485
    %v550 = vunpack.c.l.b16 %v486
    %v551 = vunpack.c.l.b16 %v487
    %v552 = vunpack.c.l.b16 %v488
    %v553 = vpack.c.b16 %v546, %v545
    %v554 = vpack.c.b16 %v548, %v547
    %v555 = vpack.c.b16 %v550, %v549
    %v556 = vpack.c.b16 %v552, %v551
    %vm557 = vcmask 523264
    %v559 = vsel %vm557, %v553, 0
    %v562 = vsel %vm557, %v554, 0
    %v565 = vsel %vm557, %v555, 0
    %v568 = vsel %vm557, %v556, 0
    %570 = vmatprep.subr.bf16.mxu0 0
    %571 = vmatpush1.bf16.msra.mxu0 0
    %572 = vmatprep.subr.bf16.mxu0 0
    %573 = vmatpush1.bf16.msra.mxu0 0
    %574 = vmatprep.subr.bf16.mxu0 0
    %575 = vmatpush1.bf16.msra.mxu0 0
    %576 = vmatprep.subr.bf16.mxu0 0
    %577 = vmatpush1.bf16.msra.mxu0 0
    %578 = vmatprep.subr.bf16.mxu0 %v502
    %579 = vmatpush1.bf16.msra.mxu0 %v501
    %580 = vmatprep.subr.bf16.mxu0 %v498
    %581 = vmatpush1.bf16.msra.mxu0 %v497
    %582 = vmatprep.subr.bf16.mxu0 %v494
    %583 = vmatpush1.bf16.msra.mxu0 %v493
    %584 = vmatprep.subr.bf16.mxu0 %v490
    %585 = vmatpush1.bf16.msra.mxu0 %v489
    %586 = vmatprep.subr.bf16.mxu0 0
    %587 = vmatpush2.bf16.msra.mxu0 0
    %588 = vmatprep.subr.bf16.mxu0 0
    %589 = vmatpush2.bf16.msra.mxu0 0
    %590 = vmatprep.subr.bf16.mxu0 0
    %591 = vmatpush2.bf16.msra.mxu0 0
    %592 = vmatprep.subr.bf16.mxu0 0
    %593 = vmatpush2.bf16.msra.mxu0 0
    %594 = vmatprep.subr.bf16.mxu0 0
    %595 = vmatpush2.bf16.msra.mxu0 0
    %596 = vmatprep.subr.bf16.mxu0 0
    %597 = vmatpush2.bf16.msra.mxu0 0
    %598 = vmatprep.subr.bf16.mxu0 0
    %599 = vmatpush2.bf16.msra.mxu0 0
    %600 = vmatprep.subr.bf16.mxu0 0
    %601 = vmatpush2.bf16.msra.mxu0 0
    %602 = vmatprep.mubr.bf16.mxu0 0
    %603 = vmatmul.mubr.bf16.gmra.mxu0 %v559
    %v604 = vpop.f32.mrf.mxu0
    %v605 = vadd.f32 %v507, %v604
    %v606 = vpop.f32.mrf.mxu0
    %v607 = vadd.f32 %v507, %v606
    %v608 = vpop.f32.mrf.mxu0
    %v609 = vadd.f32 %v511, %v608
    %v610 = vpop.f32.mrf.mxu0
    %v611 = vadd.f32 %v511, %v610
    %612 = vmatprep.mubr.bf16.mxu0 0
    %613 = vmatmul.mubr.bf16.gmra.mxu0 %v562
    %v614 = vpop.f32.mrf.mxu0
    %v615 = vadd.f32 %v515, %v614
    %v616 = vpop.f32.mrf.mxu0
    %v617 = vadd.f32 %v515, %v616
    %v618 = vpop.f32.mrf.mxu0
    %v619 = vadd.f32 %v519, %v618
    %v620 = vpop.f32.mrf.mxu0
    %v621 = vadd.f32 %v519, %v620
    %622 = vmatprep.mubr.bf16.mxu0 0
    %623 = vmatmul.mubr.bf16.gmra.mxu0 %v565
    %v624 = vpop.f32.mrf.mxu0
    %v625 = vadd.f32 %v523, %v624
    %v626 = vpop.f32.mrf.mxu0
    %v627 = vadd.f32 %v523, %v626
    %v628 = vpop.f32.mrf.mxu0
    %v629 = vadd.f32 %v527, %v628
    %v630 = vpop.f32.mrf.mxu0
    %v631 = vadd.f32 %v527, %v630
    %632 = vmatprep.mubr.bf16.mxu0 0
    %633 = vmatmul.mubr.bf16.gmra.mxu0 %v568
    %v634 = vpop.f32.mrf.mxu0
    %v635 = vadd.f32 %v531, %v634
    %v636 = vpop.f32.mrf.mxu0
    %v637 = vadd.f32 %v531, %v636
    %v638 = vpop.f32.mrf.mxu0
    %v639 = vadd.f32 %v535, %v638
    %v640 = vpop.f32.mrf.mxu0
    %v641 = vadd.f32 %v535, %v640
    %642 = vdwg.mxu0
    %643 = vmatprep.subr.bf16.mxu0 0
    %644 = vmatpush1.bf16.msra.mxu0 0
    %645 = vmatprep.subr.bf16.mxu0 0
    %646 = vmatpush1.bf16.msra.mxu0 0
    %647 = vmatprep.subr.bf16.mxu0 0
    %648 = vmatpush1.bf16.msra.mxu0 0
    %649 = vmatprep.subr.bf16.mxu0 0
    %650 = vmatpush1.bf16.msra.mxu0 0
    %651 = vmatprep.subr.bf16.mxu0 %v504
    %652 = vmatpush1.bf16.msra.mxu0 %v503
    %653 = vmatprep.subr.bf16.mxu0 %v500
    %654 = vmatpush1.bf16.msra.mxu0 %v499
    %655 = vmatprep.subr.bf16.mxu0 %v496
    %656 = vmatpush1.bf16.msra.mxu0 %v495
    %657 = vmatprep.subr.bf16.mxu0 %v492
    %658 = vmatpush1.bf16.msra.mxu0 %v491
    %659 = vmatprep.subr.bf16.mxu0 0
    %660 = vmatpush2.bf16.msra.mxu0 0
    %661 = vmatprep.subr.bf16.mxu0 0
    %662 = vmatpush2.bf16.msra.mxu0 0
    %663 = vmatprep.subr.bf16.mxu0 0
    %664 = vmatpush2.bf16.msra.mxu0 0
    %665 = vmatprep.subr.bf16.mxu0 0
    %666 = vmatpush2.bf16.msra.mxu0 0
    %667 = vmatprep.subr.bf16.mxu0 0
    %668 = vmatpush2.bf16.msra.mxu0 0
    %669 = vmatprep.subr.bf16.mxu0 0
    %670 = vmatpush2.bf16.msra.mxu0 0
    %671 = vmatprep.subr.bf16.mxu0 0
    %672 = vmatpush2.bf16.msra.mxu0 0
    %673 = vmatprep.subr.bf16.mxu0 0
    %674 = vmatpush2.bf16.msra.mxu0 0
    %675 = vmatprep.mubr.bf16.mxu0 0
    %676 = vmatmul.mubr.bf16.gmra.mxu0 %v559
    %v677 = vpop.f32.mrf.mxu0
    %v678 = vadd.f32 %v507, %v677
    %v679 = vpop.f32.mrf.mxu0
    %v680 = vadd.f32 %v507, %v679
    %v681 = vpop.f32.mrf.mxu0
    %v682 = vadd.f32 %v511, %v681
    %v683 = vpop.f32.mrf.mxu0
    %v684 = vadd.f32 %v511, %v683
    %685 = vmatprep.mubr.bf16.mxu0 0
    %686 = vmatmul.mubr.bf16.gmra.mxu0 %v562
    %v687 = vpop.f32.mrf.mxu0
    %v688 = vadd.f32 %v515, %v687
    %v689 = vpop.f32.mrf.mxu0
    %v690 = vadd.f32 %v515, %v689
    %v691 = vpop.f32.mrf.mxu0
    %v692 = vadd.f32 %v519, %v691
    %v693 = vpop.f32.mrf.mxu0
    %v694 = vadd.f32 %v519, %v693
    %695 = vmatprep.mubr.bf16.mxu0 0
    %696 = vmatmul.mubr.bf16.gmra.mxu0 %v565
    %v697 = vpop.f32.mrf.mxu0
    %v698 = vadd.f32 %v523, %v697
    %v699 = vpop.f32.mrf.mxu0
    %v700 = vadd.f32 %v523, %v699
    %v701 = vpop.f32.mrf.mxu0
    %v702 = vadd.f32 %v527, %v701
    %v703 = vpop.f32.mrf.mxu0
    %v704 = vadd.f32 %v527, %v703
    %705 = vmatprep.mubr.bf16.mxu0 0
    %706 = vmatmul.mubr.bf16.gmra.mxu0 %v568
    %v707 = vpop.f32.mrf.mxu0
    %v708 = vadd.f32 %v531, %v707
    %v709 = vpop.f32.mrf.mxu0
    %v710 = vadd.f32 %v531, %v709
    %v711 = vpop.f32.mrf.mxu0
    %v712 = vadd.f32 %v535, %v711
    %v713 = vpop.f32.mrf.mxu0
    %v714 = vadd.f32 %v535, %v713
    %715 = vdwg.mxu0
    %v716 = vmax.f32 %v605, 0.0
    %v717 = vmax.f32 %v607, 0.0
    %v718 = vmax.f32 %v678, 0.0
    %v719 = vmax.f32 %v680, 0.0
    %v720 = vmax.f32 %v609, 0.0
    %v721 = vmax.f32 %v611, 0.0
    %v722 = vmax.f32 %v682, 0.0
    %v723 = vmax.f32 %v684, 0.0
    %v724 = vmax.f32 %v615, 0.0
    %v725 = vmax.f32 %v617, 0.0
    %v726 = vmax.f32 %v688, 0.0
    %v727 = vmax.f32 %v690, 0.0
    %v728 = vmax.f32 %v619, 0.0
    %v729 = vmax.f32 %v621, 0.0
    %v730 = vmax.f32 %v692, 0.0
    %v731 = vmax.f32 %v694, 0.0
    %v732 = vmax.f32 %v625, 0.0
    %v733 = vmax.f32 %v627, 0.0
    %v734 = vmax.f32 %v698, 0.0
    %v735 = vmax.f32 %v700, 0.0
    %v736 = vmax.f32 %v629, 0.0
    %v737 = vmax.f32 %v631, 0.0
    %v738 = vmax.f32 %v702, 0.0
    %v739 = vmax.f32 %v704, 0.0
    %v740 = vmax.f32 %v635, 0.0
    %v741 = vmax.f32 %v637, 0.0
    %v742 = vmax.f32 %v708, 0.0
    %v743 = vmax.f32 %v710, 0.0
    %v744 = vmax.f32 %v639, 0.0
    %v745 = vmax.f32 %v641, 0.0
    %v746 = vmax.f32 %v712, 0.0
    %v747 = vmax.f32 %v714, 0.0
    %v748 = vld [vmem:[%s3] sm:$0xff]
    %v749 = vld [vmem:[%s3 + $0x8] sm:$0xff]
    %v750 = vld [vmem:[%s3 + $0x10] sm:$0xff]
    %v751 = vld [vmem:[%s3 + $0x18] sm:$0xff]
    %v752 = vld [vmem:[%s3 + $0x20] sm:$0xff]
    %v753 = vld [vmem:[%s3 + $0x28] sm:$0xff]
    %v754 = vld [vmem:[%s3 + $0x30] sm:$0xff]
    %v755 = vld [vmem:[%s3 + $0x38] sm:$0xff]
    %757 = vset.pattern.permute.xlu0 0
    %758 = vperm.xlu0 %757, %v748
    %v759 = vpop.permute.xlu0 %758
    %762 = vset.pattern.permute.xlu0 0
    %763 = vperm.xlu0 %762, %v749
    %v764 = vpop.permute.xlu0 %763
    %767 = vset.pattern.permute.xlu0 0
    %768 = vperm.xlu0 %767, %v750
    %v769 = vpop.permute.xlu0 %768
    %772 = vset.pattern.permute.xlu0 0
    %773 = vperm.xlu0 %772, %v751
    %v774 = vpop.permute.xlu0 %773
    %777 = vset.pattern.permute.xlu0 0
    %778 = vperm.xlu0 %777, %v752
    %v779 = vpop.permute.xlu0 %778
    %782 = vset.pattern.permute.xlu0 0
    %783 = vperm.xlu0 %782, %v753
    %v784 = vpop.permute.xlu0 %783
    %787 = vset.pattern.permute.xlu0 0
    %788 = vperm.xlu0 %787, %v754
    %v789 = vpop.permute.xlu0 %788
    %792 = vset.pattern.permute.xlu0 0
    %793 = vperm.xlu0 %792, %v755
    %v794 = vpop.permute.xlu0 %793
    %v796 = vmul.f32 %v716, %v759
    %v797 = vmul.f32 %v717, %v759
    %v798 = vmul.f32 %v718, %v759
    %v799 = vmul.f32 %v719, %v759
    %v800 = vmul.f32 %v720, %v764
    %v801 = vmul.f32 %v721, %v764
    %v802 = vmul.f32 %v722, %v764
    %v803 = vmul.f32 %v723, %v764
    %v804 = vmul.f32 %v724, %v769
    %v805 = vmul.f32 %v725, %v769
    %v806 = vmul.f32 %v726, %v769
    %v807 = vmul.f32 %v727, %v769
    %v808 = vmul.f32 %v728, %v774
    %v809 = vmul.f32 %v729, %v774
    %v810 = vmul.f32 %v730, %v774
    %v811 = vmul.f32 %v731, %v774
    %v812 = vmul.f32 %v732, %v779
    %v813 = vmul.f32 %v733, %v779
    %v814 = vmul.f32 %v734, %v779
    %v815 = vmul.f32 %v735, %v779
    %v816 = vmul.f32 %v736, %v784
    %v817 = vmul.f32 %v737, %v784
    %v818 = vmul.f32 %v738, %v784
    %v819 = vmul.f32 %v739, %v784
    %v820 = vmul.f32 %v740, %v789
    %v821 = vmul.f32 %v741, %v789
    %v822 = vmul.f32 %v742, %v789
    %v823 = vmul.f32 %v743, %v789
    %v824 = vmul.f32 %v744, %v794
    %v825 = vmul.f32 %v745, %v794
    %v826 = vmul.f32 %v746, %v794
    %v827 = vmul.f32 %v747, %v794
    %v828 = vadd.f32 %v796, %v800
    %v829 = vadd.f32 %v828, %v804
    %v830 = vadd.f32 %v829, %v808
    %v831 = vadd.f32 %v830, %v812
    %v832 = vadd.f32 %v831, %v816
    %v833 = vadd.f32 %v832, %v820
    %v834 = vadd.f32 %v833, %v824
    %v835 = vrot.slane %v834, 4
    %v836 = vadd.f32 %v834, %v835
    %v837 = vrot.slane %v836, 2
    %v838 = vadd.f32 %v836, %v837
    %v839 = vrot.slane %v838, 1
    %v840 = vadd.f32 %v838, %v839
    %v841 = vadd.f32 %v797, %v801
    %v842 = vadd.f32 %v841, %v805
    %v843 = vadd.f32 %v842, %v809
    %v844 = vadd.f32 %v843, %v813
    %v845 = vadd.f32 %v844, %v817
    %v846 = vadd.f32 %v845, %v821
    %v847 = vadd.f32 %v846, %v825
    %v848 = vrot.slane %v847, 4
    %v849 = vadd.f32 %v847, %v848
    %v850 = vrot.slane %v849, 2
    %v851 = vadd.f32 %v849, %v850
    %v852 = vrot.slane %v851, 1
    %v853 = vadd.f32 %v851, %v852
    %v854 = vadd.f32 %v798, %v802
    %v855 = vadd.f32 %v854, %v806
    %v856 = vadd.f32 %v855, %v810
    %v857 = vadd.f32 %v856, %v814
    %v858 = vadd.f32 %v857, %v818
    %v859 = vadd.f32 %v858, %v822
    %v860 = vadd.f32 %v859, %v826
    %v861 = vrot.slane %v860, 4
    %v862 = vadd.f32 %v860, %v861
    %v863 = vrot.slane %v862, 2
    %v864 = vadd.f32 %v862, %v863
    %v865 = vrot.slane %v864, 1
    %v866 = vadd.f32 %v864, %v865
    %v867 = vadd.f32 %v799, %v803
    %v868 = vadd.f32 %v867, %v807
    %v869 = vadd.f32 %v868, %v811
    %v870 = vadd.f32 %v869, %v815
    %v871 = vadd.f32 %v870, %v819
    %v872 = vadd.f32 %v871, %v823
    %v873 = vadd.f32 %v872, %v827
    %v874 = vrot.slane %v873, 4
    %v875 = vadd.f32 %v873, %v874
    %v876 = vrot.slane %v875, 2
    %v877 = vadd.f32 %v875, %v876
    %v878 = vrot.slane %v877, 1
    %v879 = vadd.f32 %v877, %v878
    %880 = vset.pattern.permute.xlu0 2
    %881 = vperm.xlu0 %880, %v22
    %v882 = vpop.permute.xlu0 %881
    %v884 = vadd.f32 %v840, %v882
    %v885 = vadd.f32 %v853, %v882
    %v886 = vadd.f32 %v866, %v882
    %v887 = vadd.f32 %v879, %v882
    %v888 = vxor.u32 %v884, 2147483648
    %v889 = vxor.u32 %v885, 2147483648
    %v890 = vxor.u32 %v886, 2147483648
    %v891 = vxor.u32 %v887, 2147483648
    %v892 = vmul.f32 %v888, 1.442695
    %v893 = vpow.pop %v892
    %v894 = vmul.f32 %v889, 1.442695
    %v895 = vpow.pop %v894
    %v896 = vmul.f32 %v890, 1.442695
    %v897 = vpow.pop %v896
    %v898 = vmul.f32 %v891, 1.442695
    %v899 = vpow.pop %v898
    %v900 = vadd.f32 %v893, 1.0
    %v901 = vadd.f32 %v895, 1.0
    %v902 = vadd.f32 %v897, 1.0
    %v903 = vadd.f32 %v899, 1.0
    %v904 = vrcp.pop %v900
    %v905 = vmul.f32 1.0, %v904
    %v906 = vrcp.pop %v901
    %v907 = vmul.f32 1.0, %v906
    %v908 = vrcp.pop %v902
    %v909 = vmul.f32 1.0, %v908
    %v910 = vrcp.pop %v903
    %v911 = vmul.f32 1.0, %v910
    %v916 = vcombine.low %v905, %v907
    %v917 = vcombine.low %v909, %v911
    %v919 = vunpack.c.l.s4 1966171168
    %v920 = vunpack.c.0.s8 %v919
    %v921 = vlaneseq
    %v922 = vshrl.u32 %v921, 7
    %v923 = vsub.s32 %v920, %v922
    %v924 = vrot.slane %v916, %v923
    %v926 = vunpack.c.l.s4 1966171168
    %v927 = vunpack.c.0.s8 %v926
    %v928 = vlaneseq
    %v929 = vshrl.u32 %v928, 7
    %v930 = vsub.s32 %v927, %v929
    %v931 = vrot.slane %v917, %v930
    %v932 = vcombine.low %v924, %v931
    %v934 = vunpack.c.l.s4 1966171168
    %v935 = vunpack.c.0.s8 %v934
    %v936 = vlaneseq
    %v937 = vshrl.u32 %v936, 7
    %v938 = vsub.s32 %v935, %v937
    %v939 = vrot.slane %v932, %v938
    %v941 = vlaneseq
    %vm942 = vcmp.ge.s32.totalorder %v941, 0
    %vm943 = vcmp.lt.s32.totalorder %v941, 512
    %vm944 = vmand %vm942, %vm943
    %945 = vst.msk [vmem:[#allocation2] sm:$0xf] %vm944, %v939
    // Predicated region
    $region22: #{discriminator_forward.1} parent=1 // pred_check
      _
    $region23: #{discriminator_forward.1} parent=1 // pred_check_branch
      %947 = sbr.rel (0) target = $region25
    $region24: #{discriminator_forward.1} parent=1 // pred_region
      %s949 = ssub.s32 64, 64
      %950 = vsyncadd [#allocation3], %s949
      %s952 = sshll.u32 [#allocation2], 4
      %s953 = int_to_ptr.vmem [resolvable:$true] %s952
      %955 = dma.vmem_to_hbm [thread:$0]  %s953, 64, %s5, [#allocation3]
    $region25: #{discriminator_forward.1} parent=1 // pred_fallthru
      _
    // Predicated region
    $region26: #{discriminator_forward.1} parent=1 // pred_check
      _
    $region27: #{discriminator_forward.1} parent=1 // pred_check_branch
      %957 = sbr.rel (0) target = $region29
    $region28: #{discriminator_forward.1} parent=1 // pred_region
      %958 = dma.done [#allocation3], 64
    $region29: #{discriminator_forward.1} parent=1 // pred_fallthru
      _
    %959 = vsyncpa [#allocation3], 1

</llo_original>
